<compile_context>
chip_gen: v5e
topology: v5e:2x2
jax: 0.10.0
libtpu: 0.0.40
codegen_flags: <defaults>
</compile_context>

<pallas_src>
import jax
import jax.numpy as jnp
from jax.experimental import pallas as pl
from jax.experimental.pallas import tpu as pltpu


def _round_up(n, m):
    return ((n + m - 1) // m) * m


def _fused_linear_kernel(x_ref, w_ref, b_ref, o_ref):
    # One MXU pass per batch tile: [tb, D0] @ [D0, Dout] + [1, Dout]
    o_ref[...] = (
        jnp.dot(x_ref[...], w_ref[...], preferred_element_type=jnp.float32)
        + b_ref[...]
    ).astype(o_ref.dtype)


def prepare_params(params):
    """Collapse the activation-free linear chain once, outside the hot path.

    Returns (W [D0, Dout], b [1, Dout]) with no lane padding: the kernel
    stores the output unpadded (block last dim == full dim), which minimizes
    HBM writeback for this bandwidth-bound kernel.
    """
    w = params["w1"] @ params["w2"] @ params["w3"]                           # [D0, Dout]
    b = (params["b1"] @ params["w2"] + params["b2"]) @ params["w3"] + params["b3"]
    return w, b


def multiple_linear_classifiers(x, fused, tile_b=2048, cast_bf16=False):
    """Fused forward pass equivalent to linear_3(linear_2(linear_1(x)))."""
    w, b = fused
    out_dtype = x.dtype
    B, D0 = x.shape
    Dout = w.shape[1]

    if cast_bf16:
        # Halves x/W read bytes (biggest relative win on v5e's ~0.8 TB/s HBM).
        # Ideally upstream already produces bf16 activations; accumulation and
        # the bias add stay f32 inside the kernel.
        x = x.astype(jnp.bfloat16)
        w = w.astype(jnp.bfloat16)

    # --- tile selection ------------------------------------------------------
    tb0 = min(tile_b, _round_up(B, 8))
    n_steps = pl.cdiv(B, tb0)

    if n_steps <= 1:
        # Single grid step: the whole cost would be pallas_call launch +
        # pipeline fixed overhead, and a v7x TensorCore would sit idle.
        return (jnp.dot(x, w, preferred_element_type=jnp.float32) + b).astype(out_dtype)

    # Re-balance the tile so every grid step carries ~equal rows (8-aligned).
    tb = _round_up(pl.cdiv(B, n_steps), 8)
    grid_n = pl.cdiv(B, tb)

    in_bytes = (x.size * jnp.dtype(x.dtype).itemsize
                + w.size * jnp.dtype(w.dtype).itemsize
                + b.size * jnp.dtype(b.dtype).itemsize)
    out_bytes = B * Dout * jnp.dtype(out_dtype).itemsize

    out = pl.pallas_call(
        _fused_linear_kernel,
        out_shape=jax.ShapeDtypeStruct((B, Dout), out_dtype),
        grid=(grid_n,),
        in_specs=[
            pl.BlockSpec((tb, D0), lambda i: (i, 0)),     # x: tiled over batch
            pl.BlockSpec((D0, Dout), lambda i: (0, 0)),   # W: VMEM-resident
            pl.BlockSpec((1, Dout), lambda i: (0, 0)),    # b: VMEM-resident
        ],
        out_specs=pl.BlockSpec((tb, Dout), lambda i: (i, 0)),
        compiler_params=pltpu.CompilerParams(
            dimension_semantics=("parallel",),            # both TCs on v7x
        ),
        cost_estimate=pl.CostEstimate(
            flops=2 * B * D0 * Dout,
            bytes_accessed=in_bytes + out_bytes,
            transcendentals=0,
        ),
    )(x, w, b)

    return out


def _init_linear(key, d_in, d_out):
    # Deterministic init mimicking nn.Linear's uniform(-1/sqrt(d_in), 1/sqrt(d_in)).
    kw, kb = jax.random.split(key)
    bound = 1.0 / jnp.sqrt(jnp.float32(d_in))
    w = jax.random.uniform(kw, (d_in, d_out), jnp.float32, -bound, bound)
    b = jax.random.uniform(kb, (1, d_out), jnp.float32, -bound, bound)
    return w, b


def reference_forward(x, params):
    h1 = x @ params["w1"] + params["b1"]
    h2 = h1 @ params["w2"] + params["b2"]
    return h2 @ params["w3"] + params["b3"]


if __name__ == "__main__":
    # Shapes consistent with the module: input_size_list=[32, 64, 48], out=10.
    input_size_list = [32, 64, 48]
    output_size = 10

    key = jax.random.PRNGKey(0)
    kx1, kx2, k1, k2, k3 = jax.random.split(key, 5)

    w1, b1 = _init_linear(k1, input_size_list[0], input_size_list[1])
    w2, b2 = _init_linear(k2, input_size_list[1], input_size_list[2])
    w3, b3 = _init_linear(k3, input_size_list[2], output_size)
    params = {"w1": w1, "b1": b1, "w2": w2, "b2": b2, "w3": w3, "b3": b3}

    # One-time collapse (outside the kernel hot path).
    fused = prepare_params(params)
    fused = jax.tree_util.tree_map(jax.block_until_ready, fused)

    # Case 1: module-scale tiny batch (B=8) -> single-step XLA fallback path.
    x_small = jax.random.normal(kx1, (8, input_size_list[0]), jnp.float32)
    out_small = jax.block_until_ready(multiple_linear_classifiers(x_small, fused))
    ref_small = reference_forward(x_small, params)
    assert out_small.shape == (8, output_size), out_small.shape
    assert jnp.allclose(out_small, ref_small, atol=1e-4, rtol=1e-4), "small-batch mismatch"

    # Case 2: Pallas path with multiple balanced grid steps and a ragged last
    # block (B=520, tile_b=256 -> 3 tiles of 176 rows, last one partial; OOB
    # reads are padded and OOB writes dropped by Pallas).
    x_big = jax.random.normal(kx2, (520, input_size_list[0]), jnp.float32)
    out_big = jax.block_until_ready(
        multiple_linear_classifiers(x_big, fused, tile_b=256)
    )
    ref_big = reference_forward(x_big, params)
    assert out_big.shape == (520, output_size), out_big.shape
    assert jnp.allclose(out_big, ref_big, atol=1e-4, rtol=1e-4), "pallas-path mismatch"

    print("KERNEL_OK")
</pallas_src>

<mosaic_0001>
module attributes {stable_mosaic.version = 11 : i64} {
  func.func @_fused_linear_kernel(%arg0: i32, %arg1: memref<176x32xf32, #tpu.memory_space<vmem>>, %arg2: memref<32x10xf32, #tpu.memory_space<vmem>>, %arg3: memref<1x10xf32, #tpu.memory_space<vmem>>, %arg4: memref<176x10xf32, #tpu.memory_space<vmem>>) attributes {dimension_semantics = [#tpu.dimension_semantics<parallel>], iteration_bounds = array<i64: 3>, scalar_prefetch = 0 : i64, scratch_operands = 0 : i64, tpu.core_type = #tpu.core_type<tc>, window_params = [{transform_indices = @transform_0, window_bounds = array<i64: 176, 32>}, {pipeline_mode = #tpu.pipeline_mode<synchronous>, transform_indices = @transform_1, window_bounds = array<i64: 32, 10>}, {pipeline_mode = #tpu.pipeline_mode<synchronous>, transform_indices = @transform_2, window_bounds = array<i64: 1, 10>}, {transform_indices = @transform_3, window_bounds = array<i64: 176, 10>}]} {
    %c0 = arith.constant 0 : index
    %c0_0 = arith.constant 0 : index
    %0 = vector.load %arg1[%c0, %c0_0] : memref<176x32xf32, #tpu.memory_space<vmem>>, vector<176x32xf32>
    %c0_1 = arith.constant 0 : index
    %c0_2 = arith.constant 0 : index
    %1 = vector.load %arg2[%c0_1, %c0_2] : memref<32x10xf32, #tpu.memory_space<vmem>>, vector<32x10xf32>
    %cst = arith.constant dense<0.000000e+00> : vector<176x10xf32>
    %2 = tpu.matmul %0, %1, %cst {dimension_numbers = #tpu.dot_dimension_numbers<[1], [0], [0], [1], [0, 0, 1, 1], [], []>} : vector<176x32xf32>, vector<32x10xf32>, vector<176x10xf32> -> vector<176x10xf32>
    %c0_3 = arith.constant 0 : index
    %c0_4 = arith.constant 0 : index
    %3 = vector.load %arg3[%c0_3, %c0_4] : memref<1x10xf32, #tpu.memory_space<vmem>>, vector<1x10xf32>
    %4 = vector.broadcast %3 : vector<1x10xf32> to vector<176x10xf32>
    %5 = arith.addf %2, %4 : vector<176x10xf32>
    %c0_5 = arith.constant 0 : index
    %c0_6 = arith.constant 0 : index
    %6 = vector.load %arg4[%c0_5, %c0_6] : memref<176x10xf32, #tpu.memory_space<vmem>>, vector<176x10xf32>
    tpu.vector_store %arg4[%c0_5, %c0_6], %5 {strides = array<i32>} : memref<176x10xf32, #tpu.memory_space<vmem>>, vector<176x10xf32>,
    return
  }
  func.func @transform_0(%arg0: i32) -> (i32, i32) {
    %c0_i32 = arith.constant 0 : i32
    %c0_i32_0 = arith.constant 0 : i32
    return %arg0, %c0_i32 : i32, i32
  }
  func.func @transform_1(%arg0: i32) -> (i32, i32) {
    %c0_i32 = arith.constant 0 : i32
    %c0_i32_0 = arith.constant 0 : i32
    %c0_i32_1 = arith.constant 0 : i32
    return %c0_i32, %c0_i32_0 : i32, i32
  }
  func.func @transform_2(%arg0: i32) -> (i32, i32) {
    %c0_i32 = arith.constant 0 : i32
    %c0_i32_0 = arith.constant 0 : i32
    %c0_i32_1 = arith.constant 0 : i32
    return %c0_i32, %c0_i32_0 : i32, i32
  }
  func.func @transform_3(%arg0: i32) -> (i32, i32) {
    %c0_i32 = arith.constant 0 : i32
    %c0_i32_0 = arith.constant 0 : i32
    return %arg0, %c0_i32 : i32, i32
  }
}

</mosaic_0001>

<llo_original>
// kernel: tpu_custom_call.1
$region0: #{tpu_custom_call.1}
  #allocation0 [shape = 'u32[]', space=smem, size = 0x4, offset = 0x4, fixed_abs, tag = 'smem constant byte address 0x4 - core index']
  #allocation1 [shape = 'u32[72,128]{1,0:T(1,128)}', space=vmem, size = 0x9000, scoped, tag = 'internal scratch']
  %s0 = inlined_call_operand.vmem [shape: f32[520,32], index: 0, kind: input, shape index: {}]
  %s1 = inlined_call_operand.vmem [shape: f32[32,10], index: 1, kind: input, shape index: {}]
  %s2 = inlined_call_operand.vmem [shape: f32[1,10], index: 2, kind: input, shape index: {}]
  %s3 = inlined_call_operand.vmem [shape: f32[520,10], index: 3, kind: output, shape index: {}]
  %s4 = sld [smem:[#allocation0]]
  $region93: #{tpu_custom_call.1} parent=0
    _
  %s6 = ssub.s32 1, %s4
  %s7 = scalar_select 0, %s6, %s4
  $region1: #{tpu_custom_call.1} parent=0
    #allocation2 [shape = 'u8[180224]{0}', space=vmem, size = 0x2c000, scoped, tag = 'output window, operand 0']
    loop: start=0, step=1, limit=5
    $region2: #{tpu_custom_call.1} parent=1 // loop_pre_header
      _
    $region3: #{tpu_custom_call.1} parent=1 // loop_header
      %s9 = sphi 0, %s13
      %p10 = scmp.ge.s32.totalorder %s9, 5
      %s19 = sphi 0, %s21
      %s22 = sphi 0, %s19
      %s23 = sphi 0, %s22
      %s39 = sphi 0, %s23
      %s43 = sphi 0, %s43
      %s45 = sphi 0, %s43
      %s46 = sphi 0, %s45
      %s60 = sphi 0, %s46
      %s64 = sphi 0, %s64
      %s66 = sphi 0, %s64
      %s67 = sphi 0, %s66
      %s81 = sphi 0, %s67
      %s87 = sphi 0, %s89
      %s90 = sphi 0, %s87
      %s91 = sphi 0, %s90
      %s107 = sphi 0, %s91
    $region4: #{tpu_custom_call.1} parent=1 // loop_header_branch
      %12 = sbr.rel (%p10) target = $region8
    $region5: #{tpu_custom_call.1} parent=1 // loop_body
      %s14 = ssub.s32 %s9, 1
      %s15 = ssub.s32 %s9, 2
      %s16 = sadd.s32 %s9, 1
      %s17 = ssub.s32 %s9, %s16
      %p18 = scmp.eq.s32.totalorder %s17, 0
      %s20 = sadd.s32 %s19, 1
      %s21 = scalar_select %p18, %s19, %s20
      %p24 = pneg %p18
      %p25 = scmp.eq.s32.totalorder %s9, 2
      %p26 = por %p24, %p25
      %p27 = scmp.ne.s32.totalorder %s19, %s22
      %p28 = scmp.eq.s32.totalorder %s9, 0
      %p29 = por %p27, %p28
      %p30 = scmp.ne.s32.totalorder %s19, %s22
      %p31 = scmp.eq.s32.totalorder %s14, 2
      %p32 = por %p30, %p31
      %p33 = scmp.ne.s32.totalorder %s22, %s23
      %p34 = scmp.eq.s32.totalorder %s14, 0
      %p35 = por %p33, %p34
      %p36 = scmp.ne.s32.totalorder %s22, %s23
      %p37 = scmp.eq.s32.totalorder %s15, 2
      %p38 = por %p36, %p37
      %p40 = scmp.ne.s32.totalorder %s23, %s39
      %p41 = scmp.eq.s32.totalorder %s15, 0
      %p42 = por %p40, %p41
      %s44 = sadd.s32 %s43, 1
      %p47 = scmp.eq.s32.totalorder %s9, 2
      %p48 = scmp.ne.s32.totalorder %s43, %s45
      %p49 = scmp.eq.s32.totalorder %s9, 0
      %p50 = por %p48, %p49
      %p51 = scmp.ne.s32.totalorder %s43, %s45
      %p52 = scmp.eq.s32.totalorder %s14, 2
      %p53 = por %p51, %p52
      %p54 = scmp.ne.s32.totalorder %s45, %s46
      %p55 = scmp.eq.s32.totalorder %s14, 0
      %p56 = por %p54, %p55
      %p57 = scmp.ne.s32.totalorder %s45, %s46
      %p58 = scmp.eq.s32.totalorder %s15, 2
      %p59 = por %p57, %p58
      %p61 = scmp.ne.s32.totalorder %s46, %s60
      %p62 = scmp.eq.s32.totalorder %s15, 0
      %p63 = por %p61, %p62
      %s65 = sadd.s32 %s64, 1
      %p68 = scmp.eq.s32.totalorder %s9, 2
      %p69 = scmp.ne.s32.totalorder %s64, %s66
      %p70 = scmp.eq.s32.totalorder %s9, 0
      %p71 = por %p69, %p70
      %p72 = scmp.ne.s32.totalorder %s64, %s66
      %p73 = scmp.eq.s32.totalorder %s14, 2
      %p74 = por %p72, %p73
      %p75 = scmp.ne.s32.totalorder %s66, %s67
      %p76 = scmp.eq.s32.totalorder %s14, 0
      %p77 = por %p75, %p76
      %p78 = scmp.ne.s32.totalorder %s66, %s67
      %p79 = scmp.eq.s32.totalorder %s15, 2
      %p80 = por %p78, %p79
      %p82 = scmp.ne.s32.totalorder %s67, %s81
      %p83 = scmp.eq.s32.totalorder %s15, 0
      %p84 = por %p82, %p83
      %s85 = ssub.s32 %s9, %s16
      %p86 = scmp.eq.s32.totalorder %s85, 0
      %s88 = sadd.s32 %s87, 1
      %s89 = scalar_select %p86, %s87, %s88
      %p92 = pneg %p86
      %p93 = scmp.eq.s32.totalorder %s9, 2
      %p94 = por %p92, %p93
      %p95 = scmp.ne.s32.totalorder %s87, %s90
      %p96 = scmp.eq.s32.totalorder %s9, 0
      %p97 = por %p95, %p96
      %p98 = scmp.ne.s32.totalorder %s87, %s90
      %p99 = scmp.eq.s32.totalorder %s14, 2
      %p100 = por %p98, %p99
      %p101 = scmp.ne.s32.totalorder %s90, %s91
      %p102 = scmp.eq.s32.totalorder %s14, 0
      %p103 = por %p101, %p102
      %p104 = scmp.ne.s32.totalorder %s90, %s91
      %p105 = scmp.eq.s32.totalorder %s15, 2
      %p106 = por %p104, %p105
      %p108 = scmp.ne.s32.totalorder %s91, %s107
      %p109 = scmp.eq.s32.totalorder %s15, 0
      %p110 = por %p108, %p109
      %p111 = scmp.le.s32.totalorder 1, %s9
      %p112 = scmp.lt.s32.totalorder %s9, 4
      %p113 = pnand %p111, %p112
      %p114 = pneg %p113
      // Predicated region
      $region9: #{tpu_custom_call.1} parent=5 // pred_check
        _
      $region10: #{tpu_custom_call.1} parent=5 // pred_check_branch
        %116 = sbr.rel (%p113) target = $region12
      $region11: #{tpu_custom_call.1} parent=5 // pred_region
        %s117 = ssub.s32 %s9, 1
        // Predicated region
        $region13: #{tpu_custom_call.1} parent=11 // pred_check
          %p118 = pneg %p56
        $region14: #{tpu_custom_call.1} parent=11 // pred_check_branch
          %120 = sbr.rel (%p118) target = $region16
        $region15: #{tpu_custom_call.1} parent=11 // pred_region
          _
        $region16: #{tpu_custom_call.1} parent=11 // pred_fallthru
          _
        // Predicated region
        $region17: #{tpu_custom_call.1} parent=11 // pred_check
          %p121 = pneg %p77
        $region18: #{tpu_custom_call.1} parent=11 // pred_check_branch
          %123 = sbr.rel (%p121) target = $region20
        $region19: #{tpu_custom_call.1} parent=11 // pred_region
          _
        $region20: #{tpu_custom_call.1} parent=11 // pred_fallthru
          _
      $region12: #{tpu_custom_call.1} parent=5 // pred_fallthru
        _
      %p124 = scmp.lt.s32.totalorder %s9, 3
      // Predicated region
      $region21: #{tpu_custom_call.1} parent=5 // pred_check
        %p125 = pneg %p124
      $region22: #{tpu_custom_call.1} parent=5 // pred_check_branch
        %127 = sbr.rel (%p125) target = $region24
      $region23: #{tpu_custom_call.1} parent=5 // pred_region
        // Predicated region
        $region25: #{tpu_custom_call.1} parent=23 // pred_check
          %p128 = pneg %p29
        $region26: #{tpu_custom_call.1} parent=23 // pred_check_branch
          %130 = sbr.rel (%p128) target = $region28
        $region27: #{tpu_custom_call.1} parent=23 // pred_region
          %s131 = smul.u32 22, %s9
          %s132 = ssub.s32 65, %s131
          %p133 = scmp.lt.s32.totalorder %s132, 22
          %s134 = scalar_select %p133, %s132, 22
          %s135 = smul.u32 8, %s134
          %p136 = scmp.lt.s32.totalorder %s131, 64
          %s137 = scalar_select %p136, %s131, 64
          %s138 = smul.addr %s137, 8
          %s139 = scalar_lea.vmem %s0, %s138
          %s140 = smul.u32 22, %s9
          %s141 = ssub.s32 65, %s140
          %p142 = scmp.lt.s32.totalorder %s141, 22
          %s143 = scalar_select %p142, %s141, 22
          %s144 = smul.u32 8, %s143
        $region28: #{tpu_custom_call.1} parent=23 // pred_fallthru
          _
      $region24: #{tpu_custom_call.1} parent=5 // pred_fallthru
        _
      %p145 = scmp.le.s32.totalorder 1, %s9
      %p146 = scmp.lt.s32.totalorder %s9, 4
      %p147 = pnand %p145, %p146
      %p148 = pneg %p147
      // Predicated region
      $region29: #{tpu_custom_call.1} parent=5 // pred_check
        _
      $region30: #{tpu_custom_call.1} parent=5 // pred_check_branch
        %150 = sbr.rel (%p147) target = $region32
      $region31: #{tpu_custom_call.1} parent=5 // pred_region
        %s151 = ssub.s32 %s9, 1
        %s152 = smul.u32 22, %s14
        %s153 = ssub.s32 65, %s152
        %p154 = scmp.lt.s32.totalorder %s153, 22
        %s155 = scalar_select %p154, %s153, 22
        %s156 = smul.u32 8, %s155
        %p157 = scmp.lt.s32.totalorder %s152, 64
        %s158 = scalar_select %p157, %s152, 64
        %s159 = smul.addr %s158, 8
        %s160 = scalar_lea.vmem %s0, %s159
        %p161 = pneg %p35
        %p162 = pneg %p32
        %p163 = pneg %p56
        %p164 = pneg %p53
        %p165 = pneg %p77
        %p166 = pneg %p74
        %p167 = pneg %p103
        %p168 = pneg %p100
        %s169 = sand.u32 %s90, 1
        %s170 = sand.u32 %s90, 1
        %s171 = smul.addr %s170, 176
        %s172 = scalar_lea.vmem [#allocation2], %s171
        %s173 = smul.u32 22, %s14
        %s174 = ssub.s32 65, %s173
        %p175 = scmp.lt.s32.totalorder %s174, 22
        %s176 = scalar_select %p175, %s174, 22
        %s177 = smul.u32 8, %s176
        %p178 = scmp.lt.s32.totalorder %s173, 64
        %s179 = scalar_select %p178, %s173, 64
        %s180 = smul.addr %s179, 8
        %s181 = scalar_lea.vmem %s0, %s180
        %s182 = smul.u32 22, %s14
        %s183 = ssub.s32 65, %s182
        %p184 = scmp.lt.s32.totalorder %s183, 22
        %s185 = scalar_select %p184, %s183, 22
        %s186 = smul.u32 8, %s185
        %s187 = smul.u32 22, %s14
        %s188 = ssub.s32 65, %s187
        %p189 = scmp.lt.s32.totalorder %s188, 22
        %s190 = scalar_select %p189, %s188, 22
        %s191 = smul.u32 8, %s190
        %v192 = vld [vmem:[%s181] sm:$0xff]
        %v193 = vld [vmem:[%s181 + $0x8] sm:$0xff]
        %v194 = vld [vmem:[%s181 + $0x10] sm:$0xff]
        %v195 = vld [vmem:[%s181 + $0x18] sm:$0xff]
        %v196 = vld [vmem:[%s181 + $0x20] sm:$0xff]
        %v197 = vld [vmem:[%s181 + $0x28] sm:$0xff]
        %v198 = vld [vmem:[%s181 + $0x30] sm:$0xff]
        %v199 = vld [vmem:[%s181 + $0x38] sm:$0xff]
        %v200 = vld [vmem:[%s181 + $0x40] sm:$0xff]
        %v201 = vld [vmem:[%s181 + $0x48] sm:$0xff]
        %v202 = vld [vmem:[%s181 + $0x50] sm:$0xff]
        %v203 = vld [vmem:[%s181 + $0x58] sm:$0xff]
        %v204 = vld [vmem:[%s181 + $0x60] sm:$0xff]
        %v205 = vld [vmem:[%s181 + $0x68] sm:$0xff]
        %v206 = vld [vmem:[%s181 + $0x70] sm:$0xff]
        %v207 = vld [vmem:[%s181 + $0x78] sm:$0xff]
        %v208 = vld [vmem:[%s181 + $0x80] sm:$0xff]
        %v209 = vld [vmem:[%s181 + $0x88] sm:$0xff]
        %v210 = vld [vmem:[%s181 + $0x90] sm:$0xff]
        %v211 = vld [vmem:[%s181 + $0x98] sm:$0xff]
        %v212 = vld [vmem:[%s181 + $0xa0] sm:$0xff]
        %v213 = vld [vmem:[%s181 + $0xa8] sm:$0xff]
        %v214 = vld [vmem:[%s1] sm:$0xff]
        %v215 = vld [vmem:[%s1 + $0x8] sm:$0xff]
        %v216 = vld [vmem:[%s1 + $0x10] sm:$0xff]
        %v217 = vld [vmem:[%s1 + $0x18] sm:$0xff]
        %v218 = vld [vmem:[%s2] sm:$0x1]
        %v220 = vperm.slane %v218, 0
        %vm222 = vcmask 261120
        %v224 = vsel %vm222, %v192, 0
        %v227 = vsel %vm222, %v193, 0
        %v230 = vsel %vm222, %v194, 0
        %v233 = vsel %vm222, %v195, 0
        %v236 = vsel %vm222, %v196, 0
        %v239 = vsel %vm222, %v197, 0
        %v242 = vsel %vm222, %v198, 0
        %v245 = vsel %vm222, %v199, 0
        %v248 = vsel %vm222, %v200, 0
        %v251 = vsel %vm222, %v201, 0
        %v254 = vsel %vm222, %v202, 0
        %v257 = vsel %vm222, %v203, 0
        %v260 = vsel %vm222, %v204, 0
        %v263 = vsel %vm222, %v205, 0
        %v266 = vsel %vm222, %v206, 0
        %v269 = vsel %vm222, %v207, 0
        %v272 = vsel %vm222, %v208, 0
        %v275 = vsel %vm222, %v209, 0
        %v278 = vsel %vm222, %v210, 0
        %v281 = vsel %vm222, %v211, 0
        %v284 = vsel %vm222, %v212, 0
        %v287 = vsel %vm222, %v213, 0
        %289 = vmatpush.msra.mxu0 0.0
        %290 = vmatpush.msra.mxu0 0.0
        %291 = vmatpush.msra.mxu0 0.0
        %292 = vmatpush.msra.mxu0 0.0
        %293 = vmatpush.msra.mxu0 0.0
        %294 = vmatpush.msra.mxu0 0.0
        %295 = vmatpush.msra.mxu0 0.0
        %296 = vmatpush.msra.mxu0 0.0
        %297 = vmatpush.msra.mxu0 0.0
        %298 = vmatpush.msra.mxu0 0.0
        %299 = vmatpush.msra.mxu0 0.0
        %300 = vmatpush.msra.mxu0 0.0
        %301 = vmatpush.msra.mxu0 %v217
        %302 = vmatpush.msra.mxu0 %v216
        %303 = vmatpush.msra.mxu0 %v215
        %304 = vmatpush.msra.mxu0 %v214
        %305 = vmatmul.f32.gmra.mxu0 %v224
        %v306 = vpop.f32.mrf.mxu0
        %v307 = vadd.f32 %v220, %v306
        %308 = vmatmul.f32.gmra.mxu0 %v227
        %v309 = vpop.f32.mrf.mxu0
        %v310 = vadd.f32 %v220, %v309
        %311 = vmatmul.f32.gmra.mxu0 %v230
        %v312 = vpop.f32.mrf.mxu0
        %v313 = vadd.f32 %v220, %v312
        %314 = vmatmul.f32.gmra.mxu0 %v233
        %v315 = vpop.f32.mrf.mxu0
        %v316 = vadd.f32 %v220, %v315
        %317 = vmatmul.f32.gmra.mxu0 %v236
        %v318 = vpop.f32.mrf.mxu0
        %v319 = vadd.f32 %v220, %v318
        %320 = vmatmul.f32.gmra.mxu0 %v239
        %v321 = vpop.f32.mrf.mxu0
        %v322 = vadd.f32 %v220, %v321
        %323 = vmatmul.f32.gmra.mxu0 %v242
        %v324 = vpop.f32.mrf.mxu0
        %v325 = vadd.f32 %v220, %v324
        %326 = vmatmul.f32.gmra.mxu0 %v245
        %v327 = vpop.f32.mrf.mxu0
        %v328 = vadd.f32 %v220, %v327
        %329 = vmatmul.f32.gmra.mxu0 %v248
        %v330 = vpop.f32.mrf.mxu0
        %v331 = vadd.f32 %v220, %v330
        %332 = vmatmul.f32.gmra.mxu0 %v251
        %v333 = vpop.f32.mrf.mxu0
        %v334 = vadd.f32 %v220, %v333
        %335 = vmatmul.f32.gmra.mxu0 %v254
        %v336 = vpop.f32.mrf.mxu0
        %v337 = vadd.f32 %v220, %v336
        %338 = vmatmul.f32.gmra.mxu0 %v257
        %v339 = vpop.f32.mrf.mxu0
        %v340 = vadd.f32 %v220, %v339
        %341 = vmatmul.f32.gmra.mxu0 %v260
        %v342 = vpop.f32.mrf.mxu0
        %v343 = vadd.f32 %v220, %v342
        %344 = vmatmul.f32.gmra.mxu0 %v263
        %v345 = vpop.f32.mrf.mxu0
        %v346 = vadd.f32 %v220, %v345
        %347 = vmatmul.f32.gmra.mxu0 %v266
        %v348 = vpop.f32.mrf.mxu0
        %v349 = vadd.f32 %v220, %v348
        %350 = vmatmul.f32.gmra.mxu0 %v269
        %v351 = vpop.f32.mrf.mxu0
        %v352 = vadd.f32 %v220, %v351
        %353 = vmatmul.f32.gmra.mxu0 %v272
        %v354 = vpop.f32.mrf.mxu0
        %v355 = vadd.f32 %v220, %v354
        %356 = vmatmul.f32.gmra.mxu0 %v275
        %v357 = vpop.f32.mrf.mxu0
        %v358 = vadd.f32 %v220, %v357
        %359 = vmatmul.f32.gmra.mxu0 %v278
        %v360 = vpop.f32.mrf.mxu0
        %v361 = vadd.f32 %v220, %v360
        %362 = vmatmul.f32.gmra.mxu0 %v281
        %v363 = vpop.f32.mrf.mxu0
        %v364 = vadd.f32 %v220, %v363
        %365 = vmatmul.f32.gmra.mxu0 %v284
        %v366 = vpop.f32.mrf.mxu0
        %v367 = vadd.f32 %v220, %v366
        %368 = vmatmul.f32.gmra.mxu0 %v287
        %v369 = vpop.f32.mrf.mxu0
        %v370 = vadd.f32 %v220, %v369
        %371 = vdwg.mxu0
        %vm372 = vcmask 80896
        %373 = vst.msk [vmem:[%s172] sm:$0xff] %vm372, %v307
        %374 = vst.msk [vmem:[%s172 + $0x8] sm:$0xff] %vm372, %v310
        %375 = vst.msk [vmem:[%s172 + $0x10] sm:$0xff] %vm372, %v313
        %376 = vst.msk [vmem:[%s172 + $0x18] sm:$0xff] %vm372, %v316
        %377 = vst.msk [vmem:[%s172 + $0x20] sm:$0xff] %vm372, %v319
        %378 = vst.msk [vmem:[%s172 + $0x28] sm:$0xff] %vm372, %v322
        %379 = vst.msk [vmem:[%s172 + $0x30] sm:$0xff] %vm372, %v325
        %380 = vst.msk [vmem:[%s172 + $0x38] sm:$0xff] %vm372, %v328
        %381 = vst.msk [vmem:[%s172 + $0x40] sm:$0xff] %vm372, %v331
        %382 = vst.msk [vmem:[%s172 + $0x48] sm:$0xff] %vm372, %v334
        %383 = vst.msk [vmem:[%s172 + $0x50] sm:$0xff] %vm372, %v337
        %384 = vst.msk [vmem:[%s172 + $0x58] sm:$0xff] %vm372, %v340
        %385 = vst.msk [vmem:[%s172 + $0x60] sm:$0xff] %vm372, %v343
        %386 = vst.msk [vmem:[%s172 + $0x68] sm:$0xff] %vm372, %v346
        %387 = vst.msk [vmem:[%s172 + $0x70] sm:$0xff] %vm372, %v349
        %388 = vst.msk [vmem:[%s172 + $0x78] sm:$0xff] %vm372, %v352
        %389 = vst.msk [vmem:[%s172 + $0x80] sm:$0xff] %vm372, %v355
        %390 = vst.msk [vmem:[%s172 + $0x88] sm:$0xff] %vm372, %v358
        %391 = vst.msk [vmem:[%s172 + $0x90] sm:$0xff] %vm372, %v361
        %392 = vst.msk [vmem:[%s172 + $0x98] sm:$0xff] %vm372, %v364
        %393 = vst.msk [vmem:[%s172 + $0xa0] sm:$0xff] %vm372, %v367
        %394 = vst.msk [vmem:[%s172 + $0xa8] sm:$0xff] %vm372, %v370
        %s395 = sand.u32 %s90, 1
        %s396 = sand.u32 %s90, 1
        %s397 = smul.addr %s396, 176
        %s398 = scalar_lea.vmem [#allocation2], %s397
        // Predicated region
        $region33: #{tpu_custom_call.1} parent=31 // pred_check
          %p399 = pneg %p100
        $region34: #{tpu_custom_call.1} parent=31 // pred_check_branch
          %401 = sbr.rel (%p399) target = $region36
        $region35: #{tpu_custom_call.1} parent=31 // pred_region
          %s402 = smul.u32 22, %s14
          %s403 = ssub.s32 65, %s402
          %p404 = scmp.lt.s32.totalorder %s403, 22
          %s405 = scalar_select %p404, %s403, 22
          %s406 = smul.u32 8, %s405
          %p407 = scmp.ne.s32.totalorder 0, %s406
          %s408 = smul.addr %s402, 8
          %s409 = scalar_lea.vmem %s3, %s408
          // Predicated region
          $region37: #{tpu_custom_call.1} parent=35 // pred_check
            %p410 = pneg %p407
          $region38: #{tpu_custom_call.1} parent=35 // pred_check_branch
            %412 = sbr.rel (%p410) target = $region40
          $region39: #{tpu_custom_call.1} parent=35 // pred_region
            // Predicated region
            $region41: #{tpu_custom_call.1} parent=39 // pred_check
              _
            $region42: #{tpu_custom_call.1} parent=39 // pred_check_branch
              %414 = sbr.rel (0) target = $region44
            $region43: #{tpu_custom_call.1} parent=39 // pred_region
              // Predicated region
              $region63: #{tpu_custom_call.1} parent=43 // pred_check
                _
              $region64: #{tpu_custom_call.1} parent=43 // pred_check_branch
                %507 = sbr.rel (0) target = $region66
              $region65: #{tpu_custom_call.1} parent=43 // pred_region
                %s508 = sdiv.u32.pop %s405, 22
                %s509 = srem.u32.pop %s405, 22
                // While loop
                $region67: #{tpu_custom_call.1} parent=65 // loop_pre_header
                  _
                $region68: #{tpu_custom_call.1} parent=65 // loop_header
                  %s511 = sphi 0, %s513
                  %p512 = scmp.ge.s32.totalorder %s511, %s508
                  %s516 = sphi 0, %s565
                  %s517 = sphi %s398, %s568
                  %s518 = sphi %s409, %s569
                $region69: #{tpu_custom_call.1} parent=65 // loop_header_branch
                  %515 = sbr.rel (%p512) target = $region73
                $region70: #{tpu_custom_call.1} parent=65 // loop_body
                  %v519 = vld [vmem:[%s517] sm:$0xff]
                  %520 = vst [vmem:[%s518] sm:$0xff] %v519
                  %v521 = vld [vmem:[%s517 + $0x8] sm:$0xff]
                  %522 = vst [vmem:[%s518 + $0x8] sm:$0xff] %v521
                  %v523 = vld [vmem:[%s517 + $0x10] sm:$0xff]
                  %524 = vst [vmem:[%s518 + $0x10] sm:$0xff] %v523
                  %v525 = vld [vmem:[%s517 + $0x18] sm:$0xff]
                  %526 = vst [vmem:[%s518 + $0x18] sm:$0xff] %v525
                  %v527 = vld [vmem:[%s517 + $0x20] sm:$0xff]
                  %528 = vst [vmem:[%s518 + $0x20] sm:$0xff] %v527
                  %v529 = vld [vmem:[%s517 + $0x28] sm:$0xff]
                  %530 = vst [vmem:[%s518 + $0x28] sm:$0xff] %v529
                  %v531 = vld [vmem:[%s517 + $0x30] sm:$0xff]
                  %532 = vst [vmem:[%s518 + $0x30] sm:$0xff] %v531
                  %v533 = vld [vmem:[%s517 + $0x38] sm:$0xff]
                  %534 = vst [vmem:[%s518 + $0x38] sm:$0xff] %v533
                  %v535 = vld [vmem:[%s517 + $0x40] sm:$0xff]
                  %536 = vst [vmem:[%s518 + $0x40] sm:$0xff] %v535
                  %v537 = vld [vmem:[%s517 + $0x48] sm:$0xff]
                  %538 = vst [vmem:[%s518 + $0x48] sm:$0xff] %v537
                  %v539 = vld [vmem:[%s517 + $0x50] sm:$0xff]
                  %540 = vst [vmem:[%s518 + $0x50] sm:$0xff] %v539
                  %v541 = vld [vmem:[%s517 + $0x58] sm:$0xff]
                  %542 = vst [vmem:[%s518 + $0x58] sm:$0xff] %v541
                  %v543 = vld [vmem:[%s517 + $0x60] sm:$0xff]
                  %544 = vst [vmem:[%s518 + $0x60] sm:$0xff] %v543
                  %v545 = vld [vmem:[%s517 + $0x68] sm:$0xff]
                  %546 = vst [vmem:[%s518 + $0x68] sm:$0xff] %v545
                  %v547 = vld [vmem:[%s517 + $0x70] sm:$0xff]
                  %548 = vst [vmem:[%s518 + $0x70] sm:$0xff] %v547
                  %v549 = vld [vmem:[%s517 + $0x78] sm:$0xff]
                  %550 = vst [vmem:[%s518 + $0x78] sm:$0xff] %v549
                  %v551 = vld [vmem:[%s517 + $0x80] sm:$0xff]
                  %552 = vst [vmem:[%s518 + $0x80] sm:$0xff] %v551
                  %v553 = vld [vmem:[%s517 + $0x88] sm:$0xff]
                  %554 = vst [vmem:[%s518 + $0x88] sm:$0xff] %v553
                  %v555 = vld [vmem:[%s517 + $0x90] sm:$0xff]
                  %556 = vst [vmem:[%s518 + $0x90] sm:$0xff] %v555
                  %v557 = vld [vmem:[%s517 + $0x98] sm:$0xff]
                  %558 = vst [vmem:[%s518 + $0x98] sm:$0xff] %v557
                  %v559 = vld [vmem:[%s517 + $0xa0] sm:$0xff]
                  %560 = vst [vmem:[%s518 + $0xa0] sm:$0xff] %v559
                  %v561 = vld [vmem:[%s517 + $0xa8] sm:$0xff]
                  %562 = vst [vmem:[%s518 + $0xa8] sm:$0xff] %v561
                  %s563 = sadd.s32 1, %s516
                  %p564 = scmp.ge.s32.totalorder %s563, %s508
                  %s565 = scalar_select %p564, 0, %s563
                  %s566 = smul.u32 %s565, 176
                  %s567 = smul.u32 %s565, 176
                  %s568 = scalar_lea.vmem %s398, %s566 [#allocation2]
                  %s569 = scalar_lea.vmem %s409, %s567
                $region71: #{tpu_custom_call.1} parent=65 // loop_footer
                  %s513 = sadd.s32 %s511, 1
                $region72: #{tpu_custom_call.1} parent=65 // loop_footer_branch
                  %510 = sbr.rel target = $region68
                $region73: #{tpu_custom_call.1} parent=65 // loop_exit
                  _
                %s570 = sdiv.u32.pop %s405, 22
                %s571 = srem.u32.pop %s405, 22
                %s572 = smul.u32 %s570, 22
                %s573 = smul.u32 8, %s572
                %s574 = scalar_lea.vmem %s398, %s573 [#allocation2]
                %s575 = smul.u32 8, %s572
                %s576 = scalar_lea.vmem %s409, %s575
                // While loop
                $region74: #{tpu_custom_call.1} parent=65 // loop_pre_header
                  _
                $region75: #{tpu_custom_call.1} parent=65 // loop_header
                  %s578 = sphi 0, %s580
                  %p579 = scmp.ge.s32.totalorder %s578, %s571
                  %s583 = sphi 0, %s590
                  %s584 = sphi %s574, %s593
                  %s585 = sphi %s576, %s594
                $region76: #{tpu_custom_call.1} parent=65 // loop_header_branch
                  %582 = sbr.rel (%p579) target = $region80
                $region77: #{tpu_custom_call.1} parent=65 // loop_body
                  %v586 = vld [vmem:[%s584] sm:$0xff]
                  %587 = vst [vmem:[%s585] sm:$0xff] %v586
                  %s588 = sadd.s32 1, %s583
                  %p589 = scmp.ge.s32.totalorder %s588, %s571
                  %s590 = scalar_select %p589, 0, %s588
                  %s591 = smul.u32 %s590, 8
                  %s592 = smul.u32 %s590, 8
                  %s593 = scalar_lea.vmem %s574, %s591 [#allocation2]
                  %s594 = scalar_lea.vmem %s576, %s592
                $region78: #{tpu_custom_call.1} parent=65 // loop_footer
                  %s580 = sadd.s32 %s578, 1
                $region79: #{tpu_custom_call.1} parent=65 // loop_footer_branch
                  %577 = sbr.rel target = $region75
                $region80: #{tpu_custom_call.1} parent=65 // loop_exit
                  _
              $region66: #{tpu_custom_call.1} parent=43 // pred_fallthru
                _
              // Predicated region
              $region81: #{tpu_custom_call.1} parent=43 // pred_check
                _
              $region82: #{tpu_custom_call.1} parent=43 // pred_check_branch
                %596 = sbr.rel target = $region84
              $region83: #{tpu_custom_call.1} parent=43 // pred_region
                _
              $region84: #{tpu_custom_call.1} parent=43 // pred_fallthru
                _
            $region44: #{tpu_custom_call.1} parent=39 // pred_fallthru
              _
            // Predicated region
            $region45: #{tpu_custom_call.1} parent=39 // pred_check
              _
            $region46: #{tpu_custom_call.1} parent=39 // pred_check_branch
              %416 = sbr.rel target = $region48
            $region47: #{tpu_custom_call.1} parent=39 // pred_region
              %s418 = ssub.s32 256, 1
              %s419 = sdiv.u32.pop %s405, 22
              %s420 = srem.u32.pop %s405, 22
              // While loop
              $region49: #{tpu_custom_call.1} parent=47 // loop_pre_header
                _
              $region50: #{tpu_custom_call.1} parent=47 // loop_header
                %s422 = sphi 0, %s424
                %p423 = scmp.ge.s32.totalorder %s422, %s419
                %s427 = sphi 0, %s476
                %s428 = sphi %s398, %s479
                %s429 = sphi %s409, %s480
              $region51: #{tpu_custom_call.1} parent=47 // loop_header_branch
                %426 = sbr.rel (%p423) target = $region55
              $region52: #{tpu_custom_call.1} parent=47 // loop_body
                %v430 = vld [vmem:[%s428] sm:%s418]
                %431 = vst [vmem:[%s429] sm:%s418] %v430
                %v432 = vld [vmem:[%s428 + $0x8] sm:%s418]
                %433 = vst [vmem:[%s429 + $0x8] sm:%s418] %v432
                %v434 = vld [vmem:[%s428 + $0x10] sm:%s418]
                %435 = vst [vmem:[%s429 + $0x10] sm:%s418] %v434
                %v436 = vld [vmem:[%s428 + $0x18] sm:%s418]
                %437 = vst [vmem:[%s429 + $0x18] sm:%s418] %v436
                %v438 = vld [vmem:[%s428 + $0x20] sm:%s418]
                %439 = vst [vmem:[%s429 + $0x20] sm:%s418] %v438
                %v440 = vld [vmem:[%s428 + $0x28] sm:%s418]
                %441 = vst [vmem:[%s429 + $0x28] sm:%s418] %v440
                %v442 = vld [vmem:[%s428 + $0x30] sm:%s418]
                %443 = vst [vmem:[%s429 + $0x30] sm:%s418] %v442
                %v444 = vld [vmem:[%s428 + $0x38] sm:%s418]
                %445 = vst [vmem:[%s429 + $0x38] sm:%s418] %v444
                %v446 = vld [vmem:[%s428 + $0x40] sm:%s418]
                %447 = vst [vmem:[%s429 + $0x40] sm:%s418] %v446
                %v448 = vld [vmem:[%s428 + $0x48] sm:%s418]
                %449 = vst [vmem:[%s429 + $0x48] sm:%s418] %v448
                %v450 = vld [vmem:[%s428 + $0x50] sm:%s418]
                %451 = vst [vmem:[%s429 + $0x50] sm:%s418] %v450
                %v452 = vld [vmem:[%s428 + $0x58] sm:%s418]
                %453 = vst [vmem:[%s429 + $0x58] sm:%s418] %v452
                %v454 = vld [vmem:[%s428 + $0x60] sm:%s418]
                %455 = vst [vmem:[%s429 + $0x60] sm:%s418] %v454
                %v456 = vld [vmem:[%s428 + $0x68] sm:%s418]
                %457 = vst [vmem:[%s429 + $0x68] sm:%s418] %v456
                %v458 = vld [vmem:[%s428 + $0x70] sm:%s418]
                %459 = vst [vmem:[%s429 + $0x70] sm:%s418] %v458
                %v460 = vld [vmem:[%s428 + $0x78] sm:%s418]
                %461 = vst [vmem:[%s429 + $0x78] sm:%s418] %v460
                %v462 = vld [vmem:[%s428 + $0x80] sm:%s418]
                %463 = vst [vmem:[%s429 + $0x80] sm:%s418] %v462
                %v464 = vld [vmem:[%s428 + $0x88] sm:%s418]
                %465 = vst [vmem:[%s429 + $0x88] sm:%s418] %v464
                %v466 = vld [vmem:[%s428 + $0x90] sm:%s418]
                %467 = vst [vmem:[%s429 + $0x90] sm:%s418] %v466
                %v468 = vld [vmem:[%s428 + $0x98] sm:%s418]
                %469 = vst [vmem:[%s429 + $0x98] sm:%s418] %v468
                %v470 = vld [vmem:[%s428 + $0xa0] sm:%s418]
                %471 = vst [vmem:[%s429 + $0xa0] sm:%s418] %v470
                %v472 = vld [vmem:[%s428 + $0xa8] sm:%s418]
                %473 = vst [vmem:[%s429 + $0xa8] sm:%s418] %v472
                %s474 = sadd.s32 1, %s427
                %p475 = scmp.ge.s32.totalorder %s474, %s419
                %s476 = scalar_select %p475, 0, %s474
                %s477 = smul.u32 %s476, 176
                %s478 = smul.u32 %s476, 176
                %s479 = scalar_lea.vmem %s398, %s477 [#allocation2]
                %s480 = scalar_lea.vmem %s409, %s478
              $region53: #{tpu_custom_call.1} parent=47 // loop_footer
                %s424 = sadd.s32 %s422, 1
              $region54: #{tpu_custom_call.1} parent=47 // loop_footer_branch
                %421 = sbr.rel target = $region50
              $region55: #{tpu_custom_call.1} parent=47 // loop_exit
                _
              %s481 = sdiv.u32.pop %s405, 22
              %s482 = srem.u32.pop %s405, 22
              %s483 = smul.u32 %s481, 22
              %s484 = smul.u32 8, %s483
              %s485 = scalar_lea.vmem %s398, %s484 [#allocation2]
              %s486 = smul.u32 8, %s483
              %s487 = scalar_lea.vmem %s409, %s486
              // While loop
              $region56: #{tpu_custom_call.1} parent=47 // loop_pre_header
                _
              $region57: #{tpu_custom_call.1} parent=47 // loop_header
                %s489 = sphi 0, %s491
                %p490 = scmp.ge.s32.totalorder %s489, %s482
                %s494 = sphi 0, %s501
                %s495 = sphi %s485, %s504
                %s496 = sphi %s487, %s505
              $region58: #{tpu_custom_call.1} parent=47 // loop_header_branch
                %493 = sbr.rel (%p490) target = $region62
              $region59: #{tpu_custom_call.1} parent=47 // loop_body
                %v497 = vld [vmem:[%s495] sm:%s418]
                %498 = vst [vmem:[%s496] sm:%s418] %v497
                %s499 = sadd.s32 1, %s494
                %p500 = scmp.ge.s32.totalorder %s499, %s482
                %s501 = scalar_select %p500, 0, %s499
                %s502 = smul.u32 %s501, 8
                %s503 = smul.u32 %s501, 8
                %s504 = scalar_lea.vmem %s485, %s502 [#allocation2]
                %s505 = scalar_lea.vmem %s487, %s503
              $region60: #{tpu_custom_call.1} parent=47 // loop_footer
                %s491 = sadd.s32 %s489, 1
              $region61: #{tpu_custom_call.1} parent=47 // loop_footer_branch
                %488 = sbr.rel target = $region57
              $region62: #{tpu_custom_call.1} parent=47 // loop_exit
                _
            $region48: #{tpu_custom_call.1} parent=39 // pred_fallthru
              _
          $region40: #{tpu_custom_call.1} parent=35 // pred_fallthru
            _
          %597 = vnop
        $region36: #{tpu_custom_call.1} parent=31 // pred_fallthru
          _
      $region32: #{tpu_custom_call.1} parent=5 // pred_fallthru
        _
      %p598 = scmp.le.s32.totalorder 2, %s9
      // Predicated region
      $region85: #{tpu_custom_call.1} parent=5 // pred_check
        %p599 = pneg %p598
      $region86: #{tpu_custom_call.1} parent=5 // pred_check_branch
        %601 = sbr.rel (%p599) target = $region88
      $region87: #{tpu_custom_call.1} parent=5 // pred_region
        %s602 = ssub.s32 %s9, 2
        // Predicated region
        $region89: #{tpu_custom_call.1} parent=87 // pred_check
          %p603 = pneg %p106
        $region90: #{tpu_custom_call.1} parent=87 // pred_check_branch
          %605 = sbr.rel (%p603) target = $region92
        $region91: #{tpu_custom_call.1} parent=87 // pred_region
          %s606 = sand.u32 %s91, 1
          %s607 = sand.u32 %s91, 1
          %s608 = smul.addr %s607, 176
          %s609 = scalar_lea.vmem [#allocation2], %s608
        $region92: #{tpu_custom_call.1} parent=87 // pred_fallthru
          _
      $region88: #{tpu_custom_call.1} parent=5 // pred_fallthru
        _
    $region6: #{tpu_custom_call.1} parent=1 // loop_footer
      %s13 = sadd.s32 1, %s9
    $region7: #{tpu_custom_call.1} parent=1 // loop_footer_branch
      %8 = sbr.rel target = $region3
    $region8: #{tpu_custom_call.1} parent=1 // loop_exit
      _

</llo_original>
